<compile_context>
chip_gen: v6e
topology: v6e:2x2x1
jax: 0.10.0
libtpu: 0.0.40
codegen_flags: <defaults>
</compile_context>

<pallas_src>
import functools
import math

import jax
import jax.numpy as jnp
from jax.experimental import pallas as pl
from jax.experimental.pallas import tpu as pltpu

BN_EPS = 1e-5
NEG_BIG = -1e30


def _round_up(x, m):
    return ((x + m - 1) // m) * m


def _choose_out_tiling(num_classes, tile_out_max=512):
    """Pad num_classes to a lane-dense multiple and pick an OUT tile size.

    tile_out_max=512 keeps the double-buffered (k, C, TILE_OUT) weight tile well inside
    the 32 MiB scoped-VMEM default even for large C (and 64 MiB physical on v7x);
    use bf16 weights to halve it further at realistic head sizes.
    """
    out_padded = _round_up(num_classes, 128)
    if out_padded <= tile_out_max:
        return out_padded, out_padded
    tile_out = tile_out_max
    return _round_up(out_padded, tile_out), tile_out


# ------------------------------- fused kernel ------------------------------ #

def fgvc_fused_kernel(x_ref, bn_ref, wn_ref, lab_ref, marg_ref,      # inputs
                      cos_out_ref, loss_ref,                          # outputs
                      fn_ref, m_ref, l_ref, t_ref,                    # VMEM scratch
                      *, s, num_classes, k, inv_hw, tile_out, compute_loss):
    # x_ref:    (B, HW, C)  channels-last backbone features
    # bn_ref:   (2, C)      row 0 = scale, row 1 = bias  (folded BatchNorm1d, eval stats)
    # wn_ref:   (k, C, TILE_OUT)  pre-L2-normalized, C-major sub-center weights
    # lab_ref:  (B, 1) int32 labels; marg_ref: (B, 4) = [cos_m, sin_m, th, mm]
    # cos_out:  (B, TILE_OUT) per-tile cosine; loss_ref: (1, 1)
    # fn_ref:   (B, C) normalized feature; m/l/t: (B, 1) online-LSE state
    j = pl.program_id(0)
    B = x_ref.shape[0]

    # --- first tile: global average pool + folded BN + L2-normalize feature --------
    @pl.when(j == 0)
    def _():
        pooled = jnp.sum(x_ref[...], axis=1) * inv_hw                 # (B, C) AdaptiveAvgPool2d(1)
        feat = pooled * bn_ref[0:1, :] + bn_ref[1:2, :]               # BatchNorm1d (eval)
        ss = jnp.sum(feat * feat, axis=-1, keepdims=True)
        fn_ref[...] = feat * jax.lax.rsqrt(jnp.maximum(ss, 1e-24))    # F.normalize
        if compute_loss:
            m_ref[...] = jnp.full(m_ref.shape, NEG_BIG, dtype=jnp.float32)
            l_ref[...] = jnp.zeros_like(l_ref)
            t_ref[...] = jnp.zeros_like(t_ref)

    # --- sub-center head on this OUT tile: k MXU dots, elementwise max -------------
    fn = fn_ref[...].astype(wn_ref.dtype)
    cosine = None
    for ksub in range(k):                                             # static unroll, k small
        c = jax.lax.dot_general(fn, wn_ref[ksub],                     # (B,C) x (C,TILE_OUT)
                                (((1,), (0,)), ((), ())),
                                preferred_element_type=jnp.float32)
        cosine = c if cosine is None else jnp.maximum(cosine, c)
    cos_out_ref[...] = cosine                                         # lane-dense store

    if not compute_loss:
        @pl.when(j == pl.num_programs(0) - 1)
        def _():
            loss_ref[...] = jnp.zeros_like(loss_ref)
        return

    # --- ArcFace adaptive margin + DenseCrossEntropy (online LSE over OUT tiles) ---
    col = jax.lax.broadcasted_iota(jnp.int32, cosine.shape, 1) + j * tile_out
    onehot = (col == lab_ref[...]).astype(jnp.float32)                # in-kernel one-hot
    valid = col < num_classes                                         # mask padded classes

    marg = marg_ref[...]
    cos_m, sin_m = marg[:, 0:1], marg[:, 1:2]
    th, mm = marg[:, 2:3], marg[:, 3:4]

    sine = jnp.sqrt(jnp.maximum(1.0 - cosine * cosine, 0.0))          # NaN guard
    phi = cosine * cos_m - sine * sin_m
    phi = jnp.where(cosine > th, phi, cosine - mm)
    logits = (onehot * phi + (1.0 - onehot) * cosine) * s
    logits = jnp.where(valid, logits, NEG_BIG)

    tile_max = jnp.max(logits, axis=-1, keepdims=True)
    m_new = jnp.maximum(m_ref[...], tile_max)
    alpha = jnp.exp(m_ref[...] - m_new)
    l_ref[...] = alpha * l_ref[...] + jnp.sum(jnp.exp(logits - m_new), axis=-1, keepdims=True)
    m_ref[...] = m_new
    t_ref[...] = t_ref[...] + jnp.sum(logits * onehot, axis=-1, keepdims=True)

    @pl.when(j == pl.num_programs(0) - 1)
    def _():
        # -log softmax at the target class, averaged over the batch
        per = m_ref[...] + jnp.log(l_ref[...]) - t_ref[...]           # (B, 1)
        loss_ref[...] = jnp.sum(per, axis=0, keepdims=True) * (1.0 / B)


# ------------------------------- pallas wrapper ----------------------------- #

def fgvc_forward(x_bhwc, bn_sb, w_norm, labels, marg4, *,
                 s, num_classes, k, tile_out, compute_loss):
    B, HW, C = x_bhwc.shape
    _, _, OUTP = w_norm.shape
    n_tiles = OUTP // tile_out

    kern = functools.partial(
        fgvc_fused_kernel, s=float(s), num_classes=num_classes, k=k,
        inv_hw=1.0 / HW, tile_out=tile_out, compute_loss=compute_loss)

    return pl.pallas_call(
        kern,
        out_shape=(jax.ShapeDtypeStruct((B, OUTP), jnp.float32),
                   jax.ShapeDtypeStruct((1, 1), jnp.float32)),
        grid=(n_tiles,),
        in_specs=[
            pl.BlockSpec((B, HW, C), lambda j: (0, 0, 0)),
            pl.BlockSpec((2, C), lambda j: (0, 0)),
            pl.BlockSpec((k, C, tile_out), lambda j: (0, 0, j)),      # streamed weight tiles
            pl.BlockSpec((B, 1), lambda j: (0, 0)),
            pl.BlockSpec((B, 4), lambda j: (0, 0)),
        ],
        out_specs=(
            pl.BlockSpec((B, tile_out), lambda j: (0, j)),
            pl.BlockSpec((1, 1), lambda j: (0, 0)),
        ),
        scratch_shapes=[
            pltpu.VMEM((B, C), jnp.float32),      # normalized feature
            pltpu.VMEM((B, 1), jnp.float32),      # running max (LSE)
            pltpu.VMEM((B, 1), jnp.float32),      # running sum-exp (LSE)
            pltpu.VMEM((B, 1), jnp.float32),      # target logit accumulator
        ],
        compiler_params=pltpu.CompilerParams(dimension_semantics=("arbitrary",)),
    )(x_bhwc, bn_sb, w_norm, labels, marg4)


# ---------------------------------- module ---------------------------------- #

class FGVCNetPallas:
    """FGVCNet (cfg.use_meta=False) forward with a single fused Pallas kernel."""

    def __init__(self, out_features, num_classes, k=3, s=30.0, margins=None, seed=0,
                 weight_dtype=jnp.float32):
        self.out_features = out_features
        self.num_classes = num_classes
        self.k = k
        self.s = s
        self.out_padded, self.tile_out = _choose_out_tiling(num_classes)

        key = jax.random.PRNGKey(seed)
        # ArcMarginProduct_subcenter weight: (num_classes*k, C), U(-stdv, stdv).
        stdv = 1.0 / math.sqrt(out_features)
        w = jax.random.uniform(key, (num_classes * k, out_features),
                               minval=-stdv, maxval=stdv, dtype=jnp.float32)
        self._w_raw = w  # kept only for the pure-JAX reference check
        # L2-normalize once on host (constant within a forward), relayout C-major:
        # row (o*k + sub)  ->  (sub, :, o), pad classes to a lane multiple with zeros.
        wn = w / jnp.maximum(jnp.sqrt(jnp.sum(w * w, axis=1, keepdims=True)), 1e-12)
        wn = jnp.transpose(wn.reshape(num_classes, k, out_features), (1, 2, 0))  # (k, C, OUT)
        wn = jnp.pad(wn, ((0, 0), (0, 0), (0, self.out_padded - num_classes)))
        self.w_norm = wn.astype(weight_dtype)   # bf16 halves the weight HBM stream

        # BatchNorm1d (eval-mode running stats) folded into one packed scale/bias block.
        gamma = jnp.ones((out_features,), jnp.float32)
        beta = jnp.zeros((out_features,), jnp.float32)
        running_mean = jnp.zeros((out_features,), jnp.float32)
        running_var = jnp.ones((out_features,), jnp.float32)
        scale = gamma * jax.lax.rsqrt(running_var + BN_EPS)
        bias = beta - running_mean * scale
        self.bn_sb = jnp.stack([scale, bias], axis=0)                  # (2, C)

        self.margins = (margins if margins is not None
                        else jnp.linspace(0.2, 0.4, num_classes, dtype=jnp.float32))

    def __call__(self, x, labels=None, training=False):
        # TODO(synk): timm backbone (forward_features) not translatable; `x` is its output.
        B, C, H, W = x.shape
        # Channels-last for the kernel: C on lanes, HW on sublanes (layout plumbing only).
        x_bhwc = jnp.transpose(x, (0, 2, 3, 1)).reshape(B, H * W, C).astype(jnp.float32)

        compute_loss = bool(training and labels is not None)           # lam=None branch
        if compute_loss:
            ms = self.margins[labels]
            marg4 = jnp.stack([jnp.cos(ms), jnp.sin(ms),
                               jnp.cos(math.pi - ms),
                               jnp.sin(math.pi - ms) * ms], axis=-1).astype(jnp.float32)
            lab = labels.astype(jnp.int32).reshape(B, 1)
        else:
            marg4 = jnp.zeros((B, 4), jnp.float32)
            lab = jnp.zeros((B, 1), jnp.int32)

        cos_pad, loss = fgvc_forward(
            x_bhwc, self.bn_sb, self.w_norm, lab, marg4,
            s=self.s, num_classes=self.num_classes, k=self.k,
            tile_out=self.tile_out, compute_loss=compute_loss)

        cosine_id = cos_pad[:, :self.num_classes]
        return cosine_id, (loss[0, 0] if compute_loss else None)


# ------------------------------ pure-JAX reference --------------------------- #

def reference_forward(x, w_raw, bn_sb, margins, labels, *, s, num_classes, k):
    B, C, H, W = x.shape
    pooled = jnp.mean(x.reshape(B, C, H * W), axis=-1)
    feat = pooled * bn_sb[0] + bn_sb[1]
    fn = feat / jnp.maximum(jnp.sqrt(jnp.sum(feat * feat, -1, keepdims=True)), 1e-12)
    wn = w_raw / jnp.maximum(jnp.sqrt(jnp.sum(w_raw * w_raw, -1, keepdims=True)), 1e-12)
    cos_all = fn @ wn.T
    cosine = jnp.max(cos_all.reshape(B, num_classes, k), axis=2)
    ms = margins[labels]
    cos_m, sin_m = jnp.cos(ms)[:, None], jnp.sin(ms)[:, None]
    th, mm = jnp.cos(math.pi - ms)[:, None], (jnp.sin(math.pi - ms) * ms)[:, None]
    onehot = jax.nn.one_hot(labels, num_classes, dtype=jnp.float32)
    sine = jnp.sqrt(jnp.maximum(1.0 - cosine * cosine, 0.0))
    phi = cosine * cos_m - sine * sin_m
    phi = jnp.where(cosine > th, phi, cosine - mm)
    logits = (onehot * phi + (1.0 - onehot) * cosine) * s
    logp = jax.nn.log_softmax(logits, axis=-1)
    loss = jnp.mean(jnp.sum(-logp * onehot, axis=-1))
    return cosine, loss


# ------------------------------------ main ----------------------------------- #

if __name__ == "__main__":
    B, C, H, W = 4, 128, 8, 8          # C = backbone.out_features
    NUM_CLASSES, K = 16, 3

    key = jax.random.PRNGKey(0)
    kx, kl = jax.random.split(key)
    x = jax.random.normal(kx, (B, C, H, W), dtype=jnp.float32)   # backbone feature map
    labels = jax.random.randint(kl, (B,), 0, NUM_CLASSES)

    net = FGVCNetPallas(out_features=C, num_classes=NUM_CLASSES, k=K, s=30.0, seed=0)
    cosine_id, loss = net(x, labels=labels, training=True)
    jax.block_until_ready((cosine_id, loss))

    assert cosine_id.shape == (B, NUM_CLASSES)
    assert loss.shape == ()

    # sanity check against a pure-JAX reference (loose tol: MXU default f32 precision)
    ref_cos, ref_loss = reference_forward(x, net._w_raw, net.bn_sb, net.margins, labels,
                                          s=30.0, num_classes=NUM_CLASSES, k=K)
    assert jnp.allclose(cosine_id, ref_cos, atol=2e-2, rtol=2e-2)
    assert jnp.allclose(loss, ref_loss, atol=2e-2, rtol=2e-2)

    print("KERNEL_OK")
</pallas_src>

<mosaic_0001>
module attributes {stable_mosaic.version = 11 : i64} {
  func.func @fgvc_fused_kernel(%arg0: i32, %arg1: memref<4x64x128xf32, #tpu.memory_space<vmem>>, %arg2: memref<2x128xf32, #tpu.memory_space<vmem>>, %arg3: memref<3x128x128xf32, #tpu.memory_space<vmem>>, %arg4: memref<4x1xi32, #tpu.memory_space<vmem>>, %arg5: memref<4x4xf32, #tpu.memory_space<vmem>>, %arg6: memref<4x128xf32, #tpu.memory_space<vmem>>, %arg7: memref<1x1xf32, #tpu.memory_space<vmem>>, %arg8: memref<4x128xf32, #tpu.memory_space<vmem>>, %arg9: memref<4x1xf32, #tpu.memory_space<vmem>>, %arg10: memref<4x1xf32, #tpu.memory_space<vmem>>, %arg11: memref<4x1xf32, #tpu.memory_space<vmem>>) attributes {dimension_semantics = [#tpu.dimension_semantics<arbitrary>], iteration_bounds = array<i64: 1>, scalar_prefetch = 0 : i64, scratch_operands = 4 : i64, tpu.core_type = #tpu.core_type<tc>, window_params = [{pipeline_mode = #tpu.pipeline_mode<synchronous>, transform_indices = @transform_0, window_bounds = array<i64: 4, 64, 128>}, {pipeline_mode = #tpu.pipeline_mode<synchronous>, transform_indices = @transform_1, window_bounds = array<i64: 2, 128>}, {transform_indices = @transform_2, window_bounds = array<i64: 3, 128, 128>}, {pipeline_mode = #tpu.pipeline_mode<synchronous>, transform_indices = @transform_3, window_bounds = array<i64: 4, 1>}, {pipeline_mode = #tpu.pipeline_mode<synchronous>, transform_indices = @transform_4, window_bounds = array<i64: 4, 4>}, {transform_indices = @transform_5, window_bounds = array<i64: 4, 128>}, {pipeline_mode = #tpu.pipeline_mode<synchronous>, transform_indices = @transform_6, window_bounds = array<i64: 1, 1>}]} {
    %c0_i32 = arith.constant 0 : i32
    %0 = arith.cmpi eq, %arg0, %c0_i32 : i32
    %1 = arith.extui %0 : i1 to i32
    %c0_i32_0 = arith.constant 0 : i32
    %2 = arith.cmpi ne, %1, %c0_i32_0 : i32
    scf.if %2 {
      %c0_41 = arith.constant 0 : index
      %c0_42 = arith.constant 0 : index
      %c0_43 = arith.constant 0 : index
      %83 = vector.load %arg1[%c0_41, %c0_42, %c0_43] : memref<4x64x128xf32, #tpu.memory_space<vmem>>, vector<4x64x128xf32>
      %cst_44 = arith.constant dense<0.000000e+00> : vector<4x128xf32>
      %84 = vector.multi_reduction <add>, %83, %cst_44 [1] : vector<4x64x128xf32> to vector<4x128xf32>
      %cst_45 = arith.constant 1.562500e-02 : f32
      %85 = vector.broadcast %cst_45 : f32 to vector<4x128xf32>
      %86 = arith.mulf %84, %85 : vector<4x128xf32>
      %c0_46 = arith.constant 0 : index
      %c0_47 = arith.constant 0 : index
      %87 = vector.load %arg2[%c0_46, %c0_47] : memref<2x128xf32, #tpu.memory_space<vmem>>, vector<1x128xf32>
      %88 = vector.broadcast %87 : vector<1x128xf32> to vector<4x128xf32>
      %89 = arith.mulf %86, %88 : vector<4x128xf32>
      %c1_48 = arith.constant 1 : index
      %c0_49 = arith.constant 0 : index
      %90 = vector.load %arg2[%c1_48, %c0_49] : memref<2x128xf32, #tpu.memory_space<vmem>>, vector<1x128xf32>
      %91 = vector.broadcast %90 : vector<1x128xf32> to vector<4x128xf32>
      %92 = arith.addf %89, %91 : vector<4x128xf32>
      %93 = arith.mulf %92, %92 : vector<4x128xf32>
      %cst_50 = arith.constant dense<0.000000e+00> : vector<4xf32>
      %94 = vector.multi_reduction <add>, %93, %cst_50 [1] : vector<4x128xf32> to vector<4xf32>
      %95 = vector.shape_cast %94 : vector<4xf32> to vector<4x1xf32>
      %cst_51 = arith.constant 1.000000e-24 : f32
      %96 = vector.broadcast %cst_51 : f32 to vector<4x1xf32>
      %97 = arith.maximumf %95, %96 : vector<4x1xf32>
      %98 = math.rsqrt %97 : vector<4x1xf32>
      %99 = vector.broadcast %98 : vector<4x1xf32> to vector<4x128xf32>
      %100 = arith.mulf %92, %99 : vector<4x128xf32>
      %c0_52 = arith.constant 0 : index
      %c0_53 = arith.constant 0 : index
      %101 = vector.load %arg8[%c0_52, %c0_53] : memref<4x128xf32, #tpu.memory_space<vmem>>, vector<4x128xf32>
      tpu.vector_store %arg8[%c0_52, %c0_53], %100 {strides = array<i32>} : memref<4x128xf32, #tpu.memory_space<vmem>>, vector<4x128xf32>,
      %cst_54 = arith.constant -1.000000e+30 : f32
      %102 = vector.broadcast %cst_54 : f32 to vector<4x1xf32>
      %c0_55 = arith.constant 0 : index
      %c0_56 = arith.constant 0 : index
      %103 = vector.load %arg9[%c0_55, %c0_56] : memref<4x1xf32, #tpu.memory_space<vmem>>, vector<4x1xf32>
      tpu.vector_store %arg9[%c0_55, %c0_56], %102 {strides = array<i32>} : memref<4x1xf32, #tpu.memory_space<vmem>>, vector<4x1xf32>,
      %cst_57 = arith.constant 0.000000e+00 : f32
      %104 = vector.broadcast %cst_57 : f32 to vector<4x1xf32>
      %c0_58 = arith.constant 0 : index
      %c0_59 = arith.constant 0 : index
      %105 = vector.load %arg10[%c0_58, %c0_59] : memref<4x1xf32, #tpu.memory_space<vmem>>, vector<4x1xf32>
      tpu.vector_store %arg10[%c0_58, %c0_59], %104 {strides = array<i32>} : memref<4x1xf32, #tpu.memory_space<vmem>>, vector<4x1xf32>,
      %cst_60 = arith.constant 0.000000e+00 : f32
      %106 = vector.broadcast %cst_60 : f32 to vector<4x1xf32>
      %c0_61 = arith.constant 0 : index
      %c0_62 = arith.constant 0 : index
      %107 = vector.load %arg11[%c0_61, %c0_62] : memref<4x1xf32, #tpu.memory_space<vmem>>, vector<4x1xf32>
      tpu.vector_store %arg11[%c0_61, %c0_62], %106 {strides = array<i32>} : memref<4x1xf32, #tpu.memory_space<vmem>>, vector<4x1xf32>,
    } else {
    }
    %c0 = arith.constant 0 : index
    %c0_1 = arith.constant 0 : index
    %3 = vector.load %arg8[%c0, %c0_1] : memref<4x128xf32, #tpu.memory_space<vmem>>, vector<4x128xf32>
    %c0_2 = arith.constant 0 : index
    %c0_3 = arith.constant 0 : index
    %c0_4 = arith.constant 0 : index
    %4 = vector.load %arg3[%c0_2, %c0_3, %c0_4] : memref<3x128x128xf32, #tpu.memory_space<vmem>>, vector<1x128x128xf32>
    %5 = vector.shape_cast %4 : vector<1x128x128xf32> to vector<128x128xf32>
    %cst = arith.constant dense<0.000000e+00> : vector<4x128xf32>
    %6 = tpu.matmul %3, %5, %cst {dimension_numbers = #tpu.dot_dimension_numbers<[1], [0], [0], [1], [0, 0, 1, 1], [], []>} : vector<4x128xf32>, vector<128x128xf32>, vector<4x128xf32> -> vector<4x128xf32>
    %c1 = arith.constant 1 : index
    %c0_5 = arith.constant 0 : index
    %c0_6 = arith.constant 0 : index
    %7 = vector.load %arg3[%c1, %c0_5, %c0_6] : memref<3x128x128xf32, #tpu.memory_space<vmem>>, vector<1x128x128xf32>
    %8 = vector.shape_cast %7 : vector<1x128x128xf32> to vector<128x128xf32>
    %cst_7 = arith.constant dense<0.000000e+00> : vector<4x128xf32>
    %9 = tpu.matmul %3, %8, %cst_7 {dimension_numbers = #tpu.dot_dimension_numbers<[1], [0], [0], [1], [0, 0, 1, 1], [], []>} : vector<4x128xf32>, vector<128x128xf32>, vector<4x128xf32> -> vector<4x128xf32>
    %10 = arith.maximumf %6, %9 : vector<4x128xf32>
    %c2 = arith.constant 2 : index
    %c0_8 = arith.constant 0 : index
    %c0_9 = arith.constant 0 : index
    %11 = vector.load %arg3[%c2, %c0_8, %c0_9] : memref<3x128x128xf32, #tpu.memory_space<vmem>>, vector<1x128x128xf32>
    %12 = vector.shape_cast %11 : vector<1x128x128xf32> to vector<128x128xf32>
    %cst_10 = arith.constant dense<0.000000e+00> : vector<4x128xf32>
    %13 = tpu.matmul %3, %12, %cst_10 {dimension_numbers = #tpu.dot_dimension_numbers<[1], [0], [0], [1], [0, 0, 1, 1], [], []>} : vector<4x128xf32>, vector<128x128xf32>, vector<4x128xf32> -> vector<4x128xf32>
    %14 = arith.maximumf %10, %13 : vector<4x128xf32>
    %c0_11 = arith.constant 0 : index
    %c0_12 = arith.constant 0 : index
    %15 = vector.load %arg6[%c0_11, %c0_12] : memref<4x128xf32, #tpu.memory_space<vmem>>, vector<4x128xf32>
    tpu.vector_store %arg6[%c0_11, %c0_12], %14 {strides = array<i32>} : memref<4x128xf32, #tpu.memory_space<vmem>>, vector<4x128xf32>,
    %16 = tpu.iota {dimensions = array<i32: 1>} : vector<4x128xi32>
    %c128_i32 = arith.constant 128 : i32
    %17 = arith.muli %arg0, %c128_i32 : i32
    %18 = vector.broadcast %17 : i32 to vector<4x128xi32>
    %19 = arith.addi %16, %18 : vector<4x128xi32>
    %c0_13 = arith.constant 0 : index
    %c0_14 = arith.constant 0 : index
    %20 = vector.load %arg4[%c0_13, %c0_14] : memref<4x1xi32, #tpu.memory_space<vmem>>, vector<4x1xi32>
    %21 = vector.broadcast %20 : vector<4x1xi32> to vector<4x128xi32>
    %22 = arith.cmpi eq, %19, %21 : vector<4x128xi32>
    %23 = arith.extui %22 : vector<4x128xi1> to vector<4x128xi32>
    %24 = arith.sitofp %23 : vector<4x128xi32> to vector<4x128xf32>
    %c16_i32 = arith.constant 16 : i32
    %25 = vector.broadcast %c16_i32 : i32 to vector<4x128xi32>
    %26 = arith.cmpi slt, %19, %25 : vector<4x128xi32>
    %c0_15 = arith.constant 0 : index
    %c0_16 = arith.constant 0 : index
    %27 = vector.load %arg5[%c0_15, %c0_16] : memref<4x4xf32, #tpu.memory_space<vmem>>, vector<4x4xf32>
    %28 = vector.extract_strided_slice %27 {offsets = [0, 0], sizes = [4, 1], strides = [1, 1]} : vector<4x4xf32> to vector<4x1xf32>
    %29 = vector.extract_strided_slice %27 {offsets = [0, 1], sizes = [4, 1], strides = [1, 1]} : vector<4x4xf32> to vector<4x1xf32>
    %30 = vector.extract_strided_slice %27 {offsets = [0, 2], sizes = [4, 1], strides = [1, 1]} : vector<4x4xf32> to vector<4x1xf32>
    %31 = vector.extract_strided_slice %27 {offsets = [0, 3], sizes = [4, 1], strides = [1, 1]} : vector<4x4xf32> to vector<4x1xf32>
    %32 = arith.mulf %14, %14 : vector<4x128xf32>
    %cst_17 = arith.constant 1.000000e+00 : f32
    %33 = vector.broadcast %cst_17 : f32 to vector<4x128xf32>
    %34 = arith.subf %33, %32 : vector<4x128xf32>
    %cst_18 = arith.constant 0.000000e+00 : f32
    %35 = vector.broadcast %cst_18 : f32 to vector<4x128xf32>
    %36 = arith.maximumf %34, %35 : vector<4x128xf32>
    %37 = math.sqrt %36 : vector<4x128xf32>
    %38 = vector.broadcast %28 : vector<4x1xf32> to vector<4x128xf32>
    %39 = arith.mulf %14, %38 : vector<4x128xf32>
    %40 = vector.broadcast %29 : vector<4x1xf32> to vector<4x128xf32>
    %41 = arith.mulf %37, %40 : vector<4x128xf32>
    %42 = arith.subf %39, %41 : vector<4x128xf32>
    %43 = vector.broadcast %30 : vector<4x1xf32> to vector<4x128xf32>
    %44 = arith.cmpf ogt, %14, %43 : vector<4x128xf32>
    %45 = vector.broadcast %31 : vector<4x1xf32> to vector<4x128xf32>
    %46 = arith.subf %14, %45 : vector<4x128xf32>
    %47 = arith.select %44, %42, %46 : vector<4x128xi1>, vector<4x128xf32>
    %48 = arith.mulf %24, %47 : vector<4x128xf32>
    %cst_19 = arith.constant 1.000000e+00 : f32
    %49 = vector.broadcast %cst_19 : f32 to vector<4x128xf32>
    %50 = arith.subf %49, %24 : vector<4x128xf32>
    %51 = arith.mulf %50, %14 : vector<4x128xf32>
    %52 = arith.addf %48, %51 : vector<4x128xf32>
    %cst_20 = arith.constant 3.000000e+01 : f32
    %53 = vector.broadcast %cst_20 : f32 to vector<4x128xf32>
    %54 = arith.mulf %52, %53 : vector<4x128xf32>
    %cst_21 = arith.constant -1.000000e+30 : f32
    %55 = vector.broadcast %cst_21 : f32 to vector<4x128xf32>
    %56 = arith.select %26, %54, %55 : vector<4x128xi1>, vector<4x128xf32>
    %cst_22 = arith.constant dense<0xFF800000> : vector<4xf32>
    %57 = vector.multi_reduction <maximumf>, %56, %cst_22 [1] : vector<4x128xf32> to vector<4xf32>
    %58 = vector.shape_cast %57 : vector<4xf32> to vector<4x1xf32>
    %c0_23 = arith.constant 0 : index
    %c0_24 = arith.constant 0 : index
    %59 = vector.load %arg9[%c0_23, %c0_24] : memref<4x1xf32, #tpu.memory_space<vmem>>, vector<4x1xf32>
    %60 = arith.maximumf %59, %58 : vector<4x1xf32>
    %c0_25 = arith.constant 0 : index
    %c0_26 = arith.constant 0 : index
    %61 = vector.load %arg9[%c0_25, %c0_26] : memref<4x1xf32, #tpu.memory_space<vmem>>, vector<4x1xf32>
    %62 = arith.subf %61, %60 : vector<4x1xf32>
    %63 = math.exp %62 : vector<4x1xf32>
    %c0_27 = arith.constant 0 : index
    %c0_28 = arith.constant 0 : index
    %64 = vector.load %arg10[%c0_27, %c0_28] : memref<4x1xf32, #tpu.memory_space<vmem>>, vector<4x1xf32>
    %65 = arith.mulf %63, %64 : vector<4x1xf32>
    %66 = vector.broadcast %60 : vector<4x1xf32> to vector<4x128xf32>
    %67 = arith.subf %56, %66 : vector<4x128xf32>
    %68 = math.exp %67 : vector<4x128xf32>
    %cst_29 = arith.constant dense<0.000000e+00> : vector<4xf32>
    %69 = vector.multi_reduction <add>, %68, %cst_29 [1] : vector<4x128xf32> to vector<4xf32>
    %70 = vector.shape_cast %69 : vector<4xf32> to vector<4x1xf32>
    %71 = arith.addf %65, %70 : vector<4x1xf32>
    %c0_30 = arith.constant 0 : index
    %c0_31 = arith.constant 0 : index
    %72 = vector.load %arg10[%c0_30, %c0_31] : memref<4x1xf32, #tpu.memory_space<vmem>>, vector<4x1xf32>
    tpu.vector_store %arg10[%c0_30, %c0_31], %71 {strides = array<i32>} : memref<4x1xf32, #tpu.memory_space<vmem>>, vector<4x1xf32>,
    %c0_32 = arith.constant 0 : index
    %c0_33 = arith.constant 0 : index
    %73 = vector.load %arg9[%c0_32, %c0_33] : memref<4x1xf32, #tpu.memory_space<vmem>>, vector<4x1xf32>
    tpu.vector_store %arg9[%c0_32, %c0_33], %60 {strides = array<i32>} : memref<4x1xf32, #tpu.memory_space<vmem>>, vector<4x1xf32>,
    %c0_34 = arith.constant 0 : index
    %c0_35 = arith.constant 0 : index
    %74 = vector.load %arg11[%c0_34, %c0_35] : memref<4x1xf32, #tpu.memory_space<vmem>>, vector<4x1xf32>
    %75 = arith.mulf %56, %24 : vector<4x128xf32>
    %cst_36 = arith.constant dense<0.000000e+00> : vector<4xf32>
    %76 = vector.multi_reduction <add>, %75, %cst_36 [1] : vector<4x128xf32> to vector<4xf32>
    %77 = vector.shape_cast %76 : vector<4xf32> to vector<4x1xf32>
    %78 = arith.addf %74, %77 : vector<4x1xf32>
    %c0_37 = arith.constant 0 : index
    %c0_38 = arith.constant 0 : index
    %79 = vector.load %arg11[%c0_37, %c0_38] : memref<4x1xf32, #tpu.memory_space<vmem>>, vector<4x1xf32>
    tpu.vector_store %arg11[%c0_37, %c0_38], %78 {strides = array<i32>} : memref<4x1xf32, #tpu.memory_space<vmem>>, vector<4x1xf32>,
    %c0_i32_39 = arith.constant 0 : i32
    %80 = arith.cmpi eq, %arg0, %c0_i32_39 : i32
    %81 = arith.extui %80 : i1 to i32
    %c0_i32_40 = arith.constant 0 : i32
    %82 = arith.cmpi ne, %81, %c0_i32_40 : i32
    scf.if %82 {
      %c0_41 = arith.constant 0 : index
      %c0_42 = arith.constant 0 : index
      %83 = vector.load %arg9[%c0_41, %c0_42] : memref<4x1xf32, #tpu.memory_space<vmem>>, vector<4x1xf32>
      %c0_43 = arith.constant 0 : index
      %c0_44 = arith.constant 0 : index
      %84 = vector.load %arg10[%c0_43, %c0_44] : memref<4x1xf32, #tpu.memory_space<vmem>>, vector<4x1xf32>
      %85 = math.log %84 : vector<4x1xf32>
      %86 = arith.addf %83, %85 : vector<4x1xf32>
      %c0_45 = arith.constant 0 : index
      %c0_46 = arith.constant 0 : index
      %87 = vector.load %arg11[%c0_45, %c0_46] : memref<4x1xf32, #tpu.memory_space<vmem>>, vector<4x1xf32>
      %88 = arith.subf %86, %87 : vector<4x1xf32>
      %cst_47 = arith.constant dense<0.000000e+00> : vector<1xf32>
      %89 = vector.multi_reduction <add>, %88, %cst_47 [0] : vector<4x1xf32> to vector<1xf32>
      %90 = vector.shape_cast %89 : vector<1xf32> to vector<1x1xf32>
      %cst_48 = arith.constant 2.500000e-01 : f32
      %91 = vector.broadcast %cst_48 : f32 to vector<1x1xf32>
      %92 = arith.mulf %90, %91 : vector<1x1xf32>
      %c0_49 = arith.constant 0 : index
      %c0_50 = arith.constant 0 : index
      %93 = vector.load %arg7[%c0_49, %c0_50] : memref<1x1xf32, #tpu.memory_space<vmem>>, vector<1x1xf32>
      tpu.vector_store %arg7[%c0_49, %c0_50], %92 {strides = array<i32>} : memref<1x1xf32, #tpu.memory_space<vmem>>, vector<1x1xf32>,
    } else {
    }
    return
  }
  func.func @transform_0(%arg0: i32) -> (i32, i32, i32) {
    %c0_i32 = arith.constant 0 : i32
    %c0_i32_0 = arith.constant 0 : i32
    %c0_i32_1 = arith.constant 0 : i32
    %c0_i32_2 = arith.constant 0 : i32
    return %c0_i32, %c0_i32_0, %c0_i32_1 : i32, i32, i32
  }
  func.func @transform_1(%arg0: i32) -> (i32, i32) {
    %c0_i32 = arith.constant 0 : i32
    %c0_i32_0 = arith.constant 0 : i32
    %c0_i32_1 = arith.constant 0 : i32
    return %c0_i32, %c0_i32_0 : i32, i32
  }
  func.func @transform_2(%arg0: i32) -> (i32, i32, i32) {
    %c0_i32 = arith.constant 0 : i32
    %c0_i32_0 = arith.constant 0 : i32
    %c0_i32_1 = arith.constant 0 : i32
    return %c0_i32, %c0_i32_0, %arg0 : i32, i32, i32
  }
  func.func @transform_3(%arg0: i32) -> (i32, i32) {
    %c0_i32 = arith.constant 0 : i32
    %c0_i32_0 = arith.constant 0 : i32
    %c0_i32_1 = arith.constant 0 : i32
    return %c0_i32, %c0_i32_0 : i32, i32
  }
  func.func @transform_4(%arg0: i32) -> (i32, i32) {
    %c0_i32 = arith.constant 0 : i32
    %c0_i32_0 = arith.constant 0 : i32
    %c0_i32_1 = arith.constant 0 : i32
    return %c0_i32, %c0_i32_0 : i32, i32
  }
  func.func @transform_5(%arg0: i32) -> (i32, i32) {
    %c0_i32 = arith.constant 0 : i32
    %c0_i32_0 = arith.constant 0 : i32
    return %c0_i32, %arg0 : i32, i32
  }
  func.func @transform_6(%arg0: i32) -> (i32, i32) {
    %c0_i32 = arith.constant 0 : i32
    %c0_i32_0 = arith.constant 0 : i32
    %c0_i32_1 = arith.constant 0 : i32
    return %c0_i32, %c0_i32_0 : i32, i32
  }
}

</mosaic_0001>

<llo_original>
// kernel: tpu_custom_call.1
$region0: #{tpu_custom_call.1}
  #allocation0 [shape = 'u32[]', space=smem, size = 0x4, offset = 0x4, fixed_abs, tag = 'smem constant byte address 0x4 - core index']
  #allocation1 [shape = 'u32[144,128]{1,0:T(1,128)}', space=vmem, size = 0x12000, scoped, tag = 'internal scratch']
  #allocation2 [shape = 'f32[4,128]{1,0:T(4,128)}', space=vmem, size = 0x800, scoped, tag = 'scratch operand']
  #allocation3 [shape = 'f32[4,1]{1,0:T(4,128)}', space=vmem, size = 0x800, scoped, tag = 'scratch operand']
  #allocation4 [shape = 'f32[4,1]{1,0:T(4,128)}', space=vmem, size = 0x800, scoped, tag = 'scratch operand']
  #allocation5 [shape = 'f32[4,1]{1,0:T(4,128)}', space=vmem, size = 0x800, scoped, tag = 'scratch operand']
  %s0 = inlined_call_operand.hbm [shape: f32[4,64,128], index: 0, kind: input, shape index: {}]
  %s1 = inlined_call_operand.vmem [shape: f32[2,128], index: 1, kind: input, shape index: {}]
  %s2 = inlined_call_operand.hbm [shape: f32[3,128,128], index: 2, kind: input, shape index: {}]
  %s3 = inlined_call_operand.vmem [shape: s32[4,1], index: 3, kind: input, shape index: {}]
  %s4 = inlined_call_operand.vmem [shape: f32[4,4], index: 4, kind: input, shape index: {}]
  %s5 = inlined_call_operand.hbm [shape: f32[4,128], index: 5, kind: output, shape index: {0}]
  %s6 = inlined_call_operand.hbm [shape: f32[1,1], index: 6, kind: output, shape index: {1}]
  %7 = xla_tuple %s5, %s6
  %s8 = sld [smem:[#allocation0]]
  $region54: #{tpu_custom_call.1} parent=0
    _
  %s10 = ssub.s32 1, %s8
  %s11 = scalar_select 0, %s10, %s8
  $region1: #{tpu_custom_call.1} parent=0
    #allocation6 [shape = 'u8[131072]{0}', space=vmem, size = 0x20000, scoped, tag = 'input window, operand 0, single buffered']
    #allocation7 [shape = 's32[1]{0}', space=sflag, size = 0x4, scoped, tag = 'scoped memory for tpu_custom_call.1']
    #allocation8 [shape = 's32[1]{0}', space=sflag, size = 0x4, scoped, tag = 'scoped memory for tpu_custom_call.1']
    #allocation9 [shape = 'u8[196608]{0}', space=vmem, size = 0x30000, scoped, tag = 'input window, operand 2, single buffered']
    #allocation10 [shape = 's32[1]{0}', space=sflag, size = 0x4, scoped, tag = 'scoped memory for tpu_custom_call.1']
    #allocation11 [shape = 'u8[2048]{0}', space=vmem, size = 0x800, scoped, tag = 'output window, operand 0, single buffered']
    #allocation12 [shape = 'u8[512]{0}', space=vmem, size = 0x400, scoped, tag = 'output window, operand 1, single buffered']
    #allocation13 [shape = 's32[1]{0}', space=sflag, size = 0x4, scoped, tag = 'scoped memory for tpu_custom_call.1']
    %12 = vsyncpa [#allocation7], 0
    %13 = vsyncpa [#allocation10], 0
    %14 = vsyncpa [#allocation8], 0
    %15 = vsyncpa [#allocation13], 0
    // Predicated region
    $region2: #{tpu_custom_call.1} parent=1 // pred_check
      _
    $region3: #{tpu_custom_call.1} parent=1 // pred_check_branch
      %17 = sbr.rel (0) target = $region5
    $region4: #{tpu_custom_call.1} parent=1 // pred_region
      %s19 = ssub.s32 4096, 4096
      %20 = vsyncadd [#allocation7], %s19
      %s21 = sshll.u32 [#allocation6], 4
      %s22 = int_to_ptr.vmem [resolvable:$true] %s21
      %27 = dma.hbm_to_vmem [thread:$0]  %s0, 4096, %s22, [#allocation7], 128, 128, 8
    $region5: #{tpu_custom_call.1} parent=1 // pred_fallthru
      _
    // Predicated region
    $region6: #{tpu_custom_call.1} parent=1 // pred_check
      _
    $region7: #{tpu_custom_call.1} parent=1 // pred_check_branch
      %29 = sbr.rel (0) target = $region9
    $region8: #{tpu_custom_call.1} parent=1 // pred_region
      _
    $region9: #{tpu_custom_call.1} parent=1 // pred_fallthru
      _
    // Predicated region
    $region10: #{tpu_custom_call.1} parent=1 // pred_check
      _
    $region11: #{tpu_custom_call.1} parent=1 // pred_check_branch
      %31 = sbr.rel (0) target = $region13
    $region12: #{tpu_custom_call.1} parent=1 // pred_region
      %s33 = ssub.s32 6144, 6144
      %34 = vsyncadd [#allocation10], %s33
      %s35 = sshll.u32 [#allocation9], 4
      %s36 = int_to_ptr.vmem [resolvable:$true] %s35
      %41 = dma.hbm_to_vmem [thread:$0]  %s2, 6144, %s36, [#allocation10], 128, 128, 8
    $region13: #{tpu_custom_call.1} parent=1 // pred_fallthru
      _
    // Predicated region
    $region14: #{tpu_custom_call.1} parent=1 // pred_check
      _
    $region15: #{tpu_custom_call.1} parent=1 // pred_check_branch
      %43 = sbr.rel (0) target = $region17
    $region16: #{tpu_custom_call.1} parent=1 // pred_region
      _
    $region17: #{tpu_custom_call.1} parent=1 // pred_fallthru
      _
    // Predicated region
    $region18: #{tpu_custom_call.1} parent=1 // pred_check
      _
    $region19: #{tpu_custom_call.1} parent=1 // pred_check_branch
      %45 = sbr.rel (0) target = $region21
    $region20: #{tpu_custom_call.1} parent=1 // pred_region
      _
    $region21: #{tpu_custom_call.1} parent=1 // pred_fallthru
      _
    // Predicated region
    $region22: #{tpu_custom_call.1} parent=1 // pred_check
      _
    $region23: #{tpu_custom_call.1} parent=1 // pred_check_branch
      %47 = sbr.rel (0) target = $region25
    $region24: #{tpu_custom_call.1} parent=1 // pred_region
      %48 = dma.done [#allocation7], 4096
    $region25: #{tpu_custom_call.1} parent=1 // pred_fallthru
      _
    // Predicated region
    $region26: #{tpu_custom_call.1} parent=1 // pred_check
      _
    $region27: #{tpu_custom_call.1} parent=1 // pred_check_branch
      %50 = sbr.rel (0) target = $region29
    $region28: #{tpu_custom_call.1} parent=1 // pred_region
      %51 = dma.done [#allocation10], 6144
    $region29: #{tpu_custom_call.1} parent=1 // pred_fallthru
      _
    %p52 = scmp.eq.s32.totalorder 0, 0
    // Predicated region
    $region30: #{tpu_custom_call.1} parent=1 // pred_check
      %p53 = pneg %p52
    $region31: #{tpu_custom_call.1} parent=1 // pred_check_branch
      %55 = sbr.rel (%p53) target = $region33
    $region32: #{tpu_custom_call.1} parent=1 // pred_region
      %v56 = vld [vmem:[#allocation6] sm:$0xff]
      %v57 = vld [vmem:[#allocation6 + $0x8] sm:$0xff]
      %v58 = vld [vmem:[#allocation6 + $0x10] sm:$0xff]
      %v59 = vld [vmem:[#allocation6 + $0x18] sm:$0xff]
      %v60 = vld [vmem:[#allocation6 + $0x20] sm:$0xff]
      %v61 = vld [vmem:[#allocation6 + $0x28] sm:$0xff]
      %v62 = vld [vmem:[#allocation6 + $0x30] sm:$0xff]
      %v63 = vld [vmem:[#allocation6 + $0x38] sm:$0xff]
      %v64 = vld [vmem:[#allocation6 + $0x40] sm:$0xff]
      %v65 = vld [vmem:[#allocation6 + $0x48] sm:$0xff]
      %v66 = vld [vmem:[#allocation6 + $0x50] sm:$0xff]
      %v67 = vld [vmem:[#allocation6 + $0x58] sm:$0xff]
      %v68 = vld [vmem:[#allocation6 + $0x60] sm:$0xff]
      %v69 = vld [vmem:[#allocation6 + $0x68] sm:$0xff]
      %v70 = vld [vmem:[#allocation6 + $0x70] sm:$0xff]
      %v71 = vld [vmem:[#allocation6 + $0x78] sm:$0xff]
      %v72 = vld [vmem:[#allocation6 + $0x80] sm:$0xff]
      %v73 = vld [vmem:[#allocation6 + $0x88] sm:$0xff]
      %v74 = vld [vmem:[#allocation6 + $0x90] sm:$0xff]
      %v75 = vld [vmem:[#allocation6 + $0x98] sm:$0xff]
      %v76 = vld [vmem:[#allocation6 + $0xa0] sm:$0xff]
      %v77 = vld [vmem:[#allocation6 + $0xa8] sm:$0xff]
      %v78 = vld [vmem:[#allocation6 + $0xb0] sm:$0xff]
      %v79 = vld [vmem:[#allocation6 + $0xb8] sm:$0xff]
      %v80 = vld [vmem:[#allocation6 + $0xc0] sm:$0xff]
      %v81 = vld [vmem:[#allocation6 + $0xc8] sm:$0xff]
      %v82 = vld [vmem:[#allocation6 + $0xd0] sm:$0xff]
      %v83 = vld [vmem:[#allocation6 + $0xd8] sm:$0xff]
      %v84 = vld [vmem:[#allocation6 + $0xe0] sm:$0xff]
      %v85 = vld [vmem:[#allocation6 + $0xe8] sm:$0xff]
      %v86 = vld [vmem:[#allocation6 + $0xf0] sm:$0xff]
      %v87 = vld [vmem:[#allocation6 + $0xf8] sm:$0xff]
      %v88 = vadd.f32 %v56, %v57
      %v89 = vadd.f32 %v88, %v58
      %v90 = vadd.f32 %v89, %v59
      %v91 = vadd.f32 %v90, %v60
      %v92 = vadd.f32 %v91, %v61
      %v93 = vadd.f32 %v92, %v62
      %v94 = vadd.f32 %v93, %v63
      %v95 = vrot.slane %v94, 4
      %v96 = vadd.f32 %v94, %v95
      %v97 = vrot.slane %v96, 2
      %v98 = vadd.f32 %v96, %v97
      %v99 = vrot.slane %v98, 1
      %v100 = vadd.f32 %v98, %v99
      %v101 = vadd.f32 %v64, %v65
      %v102 = vadd.f32 %v101, %v66
      %v103 = vadd.f32 %v102, %v67
      %v104 = vadd.f32 %v103, %v68
      %v105 = vadd.f32 %v104, %v69
      %v106 = vadd.f32 %v105, %v70
      %v107 = vadd.f32 %v106, %v71
      %v108 = vrot.slane %v107, 4
      %v109 = vadd.f32 %v107, %v108
      %v110 = vrot.slane %v109, 2
      %v111 = vadd.f32 %v109, %v110
      %v112 = vrot.slane %v111, 1
      %v113 = vadd.f32 %v111, %v112
      %v114 = vadd.f32 %v72, %v73
      %v115 = vadd.f32 %v114, %v74
      %v116 = vadd.f32 %v115, %v75
      %v117 = vadd.f32 %v116, %v76
      %v118 = vadd.f32 %v117, %v77
      %v119 = vadd.f32 %v118, %v78
      %v120 = vadd.f32 %v119, %v79
      %v121 = vrot.slane %v120, 4
      %v122 = vadd.f32 %v120, %v121
      %v123 = vrot.slane %v122, 2
      %v124 = vadd.f32 %v122, %v123
      %v125 = vrot.slane %v124, 1
      %v126 = vadd.f32 %v124, %v125
      %v127 = vadd.f32 %v80, %v81
      %v128 = vadd.f32 %v127, %v82
      %v129 = vadd.f32 %v128, %v83
      %v130 = vadd.f32 %v129, %v84
      %v131 = vadd.f32 %v130, %v85
      %v132 = vadd.f32 %v131, %v86
      %v133 = vadd.f32 %v132, %v87
      %v134 = vrot.slane %v133, 4
      %v135 = vadd.f32 %v133, %v134
      %v136 = vrot.slane %v135, 2
      %v137 = vadd.f32 %v135, %v136
      %v138 = vrot.slane %v137, 1
      %v139 = vadd.f32 %v137, %v138
      %v140 = vmul.f32 %v100, 0.015625
      %v141 = vmul.f32 %v113, 0.015625
      %v142 = vmul.f32 %v126, 0.015625
      %v143 = vmul.f32 %v139, 0.015625
      %v144 = vld [vmem:[%s1] sm:$0x1]
      %v145 = vlaneseq
      %v146 = vshrl.u32 %v145, 7
      %v147 = vsub.s32 0, %v146
      %v148 = vrot.slane %v144, %v147
      %v149 = vmul.f32 %v140, %v148
      %v150 = vmul.f32 %v141, %v148
      %v151 = vmul.f32 %v142, %v148
      %v152 = vmul.f32 %v143, %v148
      %v153 = vld [vmem:[%s1 + $0x1] sm:$0x1]
      %v154 = vlaneseq
      %v155 = vshrl.u32 %v154, 7
      %v156 = vsub.s32 0, %v155
      %v157 = vrot.slane %v153, %v156
      %v158 = vadd.f32 %v149, %v157
      %v159 = vadd.f32 %v150, %v157
      %v160 = vadd.f32 %v151, %v157
      %v161 = vadd.f32 %v152, %v157
      %v162 = vmul.f32 %v158, %v158
      %v163 = vmul.f32 %v159, %v159
      %v164 = vmul.f32 %v160, %v160
      %v165 = vmul.f32 %v161, %v161
      %v170 = vrot.slane %v163, 7
      %vm171 = vcmask 1041409
      %v172 = vsel %vm171, %v170, %v162
      %v173 = vrot.slane %v164, 6
      %vm174 = vcmask 1042434
      %v175 = vsel %vm174, %v173, %v172
      %v176 = vrot.slane %v165, 5
      %vm177 = vcmask 1043459
      %v178 = vsel %vm177, %v176, %v175
      %vm180 = vcmask 1043456
      %v181 = vsel %vm180, %v178, 0.0
      %182 = vadd.xlane.f32.xlu0 %v181
      %v183 = vpop.xlane.xlu0 %182
      %v184 = vmax.f32 %v183, 1e-24
      %v185 = vrsqrt.pop %v184
      %v187 = vrot.slane %v185, 1
      %v188 = vrot.slane %v185, 2
      %v189 = vrot.slane %v185, 3
      %v194 = vmul.f32 %v158, %v185
      %v195 = vmul.f32 %v159, %v187
      %v196 = vmul.f32 %v160, %v188
      %v197 = vmul.f32 %v161, %v189
      %v202 = vrot.slane %v195, 7
      %v203 = vsel %vm171, %v202, %v194
      %v204 = vrot.slane %v196, 6
      %v205 = vsel %vm174, %v204, %v203
      %v206 = vrot.slane %v197, 5
      %v207 = vsel %vm177, %v206, %v205
      %209 = vst [vmem:[#allocation2] sm:$0xf] %v207
      %vm210 = vcmask 3072
      %211 = vst.msk [vmem:[#allocation3] sm:$0xf] %vm210, -1e+30
      %212 = vst.msk [vmem:[#allocation4] sm:$0xf] %vm210, 0.0
      %213 = vst.msk [vmem:[#allocation5] sm:$0xf] %vm210, 0.0
    $region33: #{tpu_custom_call.1} parent=1 // pred_fallthru
      _
    %v214 = vld [vmem:[#allocation2] sm:$0xf]
    %v215 = vld [vmem:[#allocation9] sm:$0xff]
    %v216 = vld [vmem:[#allocation9 + $0x8] sm:$0xff]
    %v217 = vld [vmem:[#allocation9 + $0x10] sm:$0xff]
    %v218 = vld [vmem:[#allocation9 + $0x18] sm:$0xff]
    %v219 = vld [vmem:[#allocation9 + $0x20] sm:$0xff]
    %v220 = vld [vmem:[#allocation9 + $0x28] sm:$0xff]
    %v221 = vld [vmem:[#allocation9 + $0x30] sm:$0xff]
    %v222 = vld [vmem:[#allocation9 + $0x38] sm:$0xff]
    %v223 = vld [vmem:[#allocation9 + $0x40] sm:$0xff]
    %v224 = vld [vmem:[#allocation9 + $0x48] sm:$0xff]
    %v225 = vld [vmem:[#allocation9 + $0x50] sm:$0xff]
    %v226 = vld [vmem:[#allocation9 + $0x58] sm:$0xff]
    %v227 = vld [vmem:[#allocation9 + $0x60] sm:$0xff]
    %v228 = vld [vmem:[#allocation9 + $0x68] sm:$0xff]
    %v229 = vld [vmem:[#allocation9 + $0x70] sm:$0xff]
    %v230 = vld [vmem:[#allocation9 + $0x78] sm:$0xff]
    %231 = vmatprep.subr.mxu0 0.0
    %232 = vmatpush1.msra.mxu0 %v230
    %233 = vmatprep.subr.mxu0 0.0
    %234 = vmatpush1.msra.mxu0 %v229
    %235 = vmatprep.subr.mxu0 0.0
    %236 = vmatpush1.msra.mxu0 %v228
    %237 = vmatprep.subr.mxu0 0.0
    %238 = vmatpush1.msra.mxu0 %v227
    %239 = vmatprep.subr.mxu0 0.0
    %240 = vmatpush1.msra.mxu0 %v226
    %241 = vmatprep.subr.mxu0 0.0
    %242 = vmatpush1.msra.mxu0 %v225
    %243 = vmatprep.subr.mxu0 0.0
    %244 = vmatpush1.msra.mxu0 %v224
    %245 = vmatprep.subr.mxu0 0.0
    %246 = vmatpush1.msra.mxu0 %v223
    %247 = vmatprep.subr.mxu0 0.0
    %248 = vmatpush1.msra.mxu0 %v222
    %249 = vmatprep.subr.mxu0 0.0
    %250 = vmatpush1.msra.mxu0 %v221
    %251 = vmatprep.subr.mxu0 0.0
    %252 = vmatpush1.msra.mxu0 %v220
    %253 = vmatprep.subr.mxu0 0.0
    %254 = vmatpush1.msra.mxu0 %v219
    %255 = vmatprep.subr.mxu0 0.0
    %256 = vmatpush1.msra.mxu0 %v218
    %257 = vmatprep.subr.mxu0 0.0
    %258 = vmatpush1.msra.mxu0 %v217
    %259 = vmatprep.subr.mxu0 0.0
    %260 = vmatpush1.msra.mxu0 %v216
    %261 = vmatprep.subr.mxu0 0.0
    %262 = vmatpush1.msra.mxu0 %v215
    %263 = vmatprep.subr.mxu0 0.0
    %264 = vmatpush2.msra.mxu0 0.0
    %265 = vmatprep.subr.mxu0 0.0
    %266 = vmatpush2.msra.mxu0 0.0
    %267 = vmatprep.subr.mxu0 0.0
    %268 = vmatpush2.msra.mxu0 0.0
    %269 = vmatprep.subr.mxu0 0.0
    %270 = vmatpush2.msra.mxu0 0.0
    %271 = vmatprep.subr.mxu0 0.0
    %272 = vmatpush2.msra.mxu0 0.0
    %273 = vmatprep.subr.mxu0 0.0
    %274 = vmatpush2.msra.mxu0 0.0
    %275 = vmatprep.subr.mxu0 0.0
    %276 = vmatpush2.msra.mxu0 0.0
    %277 = vmatprep.subr.mxu0 0.0
    %278 = vmatpush2.msra.mxu0 0.0
    %279 = vmatprep.subr.mxu0 0.0
    %280 = vmatpush2.msra.mxu0 0.0
    %281 = vmatprep.subr.mxu0 0.0
    %282 = vmatpush2.msra.mxu0 0.0
    %283 = vmatprep.subr.mxu0 0.0
    %284 = vmatpush2.msra.mxu0 0.0
    %285 = vmatprep.subr.mxu0 0.0
    %286 = vmatpush2.msra.mxu0 0.0
    %287 = vmatprep.subr.mxu0 0.0
    %288 = vmatpush2.msra.mxu0 0.0
    %289 = vmatprep.subr.mxu0 0.0
    %290 = vmatpush2.msra.mxu0 0.0
    %291 = vmatprep.subr.mxu0 0.0
    %292 = vmatpush2.msra.mxu0 0.0
    %293 = vmatprep.subr.mxu0 0.0
    %294 = vmatpush2.msra.mxu0 0.0
    %295 = vmatprep.mubr.f32.mxu0 0.0
    %296 = vmatmul.mubr.f32.gmra.mxu0 %v214
    %v297 = vpop.f32.mrf.mxu0
    %v298 = vadd.f32 0.0, %v297
    %v299 = vpop.f32.mrf.mxu0
    %300 = vdwg.mxu0
    %s301 = scalar_lea.vmem [#allocation9], 128
    %v302 = vld [vmem:[%s301] sm:$0xff]
    %v303 = vld [vmem:[%s301 + $0x8] sm:$0xff]
    %v304 = vld [vmem:[%s301 + $0x10] sm:$0xff]
    %v305 = vld [vmem:[%s301 + $0x18] sm:$0xff]
    %v306 = vld [vmem:[%s301 + $0x20] sm:$0xff]
    %v307 = vld [vmem:[%s301 + $0x28] sm:$0xff]
    %v308 = vld [vmem:[%s301 + $0x30] sm:$0xff]
    %v309 = vld [vmem:[%s301 + $0x38] sm:$0xff]
    %v310 = vld [vmem:[%s301 + $0x40] sm:$0xff]
    %v311 = vld [vmem:[%s301 + $0x48] sm:$0xff]
    %v312 = vld [vmem:[%s301 + $0x50] sm:$0xff]
    %v313 = vld [vmem:[%s301 + $0x58] sm:$0xff]
    %v314 = vld [vmem:[%s301 + $0x60] sm:$0xff]
    %v315 = vld [vmem:[%s301 + $0x68] sm:$0xff]
    %v316 = vld [vmem:[%s301 + $0x70] sm:$0xff]
    %v317 = vld [vmem:[%s301 + $0x78] sm:$0xff]
    %318 = vmatprep.subr.mxu0 0.0
    %319 = vmatpush1.msra.mxu0 %v317
    %320 = vmatprep.subr.mxu0 0.0
    %321 = vmatpush1.msra.mxu0 %v316
    %322 = vmatprep.subr.mxu0 0.0
    %323 = vmatpush1.msra.mxu0 %v315
    %324 = vmatprep.subr.mxu0 0.0
    %325 = vmatpush1.msra.mxu0 %v314
    %326 = vmatprep.subr.mxu0 0.0
    %327 = vmatpush1.msra.mxu0 %v313
    %328 = vmatprep.subr.mxu0 0.0
    %329 = vmatpush1.msra.mxu0 %v312
    %330 = vmatprep.subr.mxu0 0.0
    %331 = vmatpush1.msra.mxu0 %v311
    %332 = vmatprep.subr.mxu0 0.0
    %333 = vmatpush1.msra.mxu0 %v310
    %334 = vmatprep.subr.mxu0 0.0
    %335 = vmatpush1.msra.mxu0 %v309
    %336 = vmatprep.subr.mxu0 0.0
    %337 = vmatpush1.msra.mxu0 %v308
    %338 = vmatprep.subr.mxu0 0.0
    %339 = vmatpush1.msra.mxu0 %v307
    %340 = vmatprep.subr.mxu0 0.0
    %341 = vmatpush1.msra.mxu0 %v306
    %342 = vmatprep.subr.mxu0 0.0
    %343 = vmatpush1.msra.mxu0 %v305
    %344 = vmatprep.subr.mxu0 0.0
    %345 = vmatpush1.msra.mxu0 %v304
    %346 = vmatprep.subr.mxu0 0.0
    %347 = vmatpush1.msra.mxu0 %v303
    %348 = vmatprep.subr.mxu0 0.0
    %349 = vmatpush1.msra.mxu0 %v302
    %350 = vmatprep.subr.mxu0 0.0
    %351 = vmatpush2.msra.mxu0 0.0
    %352 = vmatprep.subr.mxu0 0.0
    %353 = vmatpush2.msra.mxu0 0.0
    %354 = vmatprep.subr.mxu0 0.0
    %355 = vmatpush2.msra.mxu0 0.0
    %356 = vmatprep.subr.mxu0 0.0
    %357 = vmatpush2.msra.mxu0 0.0
    %358 = vmatprep.subr.mxu0 0.0
    %359 = vmatpush2.msra.mxu0 0.0
    %360 = vmatprep.subr.mxu0 0.0
    %361 = vmatpush2.msra.mxu0 0.0
    %362 = vmatprep.subr.mxu0 0.0
    %363 = vmatpush2.msra.mxu0 0.0
    %364 = vmatprep.subr.mxu0 0.0
    %365 = vmatpush2.msra.mxu0 0.0
    %366 = vmatprep.subr.mxu0 0.0
    %367 = vmatpush2.msra.mxu0 0.0
    %368 = vmatprep.subr.mxu0 0.0
    %369 = vmatpush2.msra.mxu0 0.0
    %370 = vmatprep.subr.mxu0 0.0
    %371 = vmatpush2.msra.mxu0 0.0
    %372 = vmatprep.subr.mxu0 0.0
    %373 = vmatpush2.msra.mxu0 0.0
    %374 = vmatprep.subr.mxu0 0.0
    %375 = vmatpush2.msra.mxu0 0.0
    %376 = vmatprep.subr.mxu0 0.0
    %377 = vmatpush2.msra.mxu0 0.0
    %378 = vmatprep.subr.mxu0 0.0
    %379 = vmatpush2.msra.mxu0 0.0
    %380 = vmatprep.subr.mxu0 0.0
    %381 = vmatpush2.msra.mxu0 0.0
    %382 = vmatprep.mubr.f32.mxu0 0.0
    %383 = vmatmul.mubr.f32.gmra.mxu0 %v214
    %v384 = vpop.f32.mrf.mxu0
    %v385 = vadd.f32 0.0, %v384
    %v386 = vpop.f32.mrf.mxu0
    %387 = vdwg.mxu0
    %v388 = vmax.f32 %v298, %v385
    %s389 = scalar_lea.vmem [#allocation9], 256
    %v390 = vld [vmem:[%s389] sm:$0xff]
    %v391 = vld [vmem:[%s389 + $0x8] sm:$0xff]
    %v392 = vld [vmem:[%s389 + $0x10] sm:$0xff]
    %v393 = vld [vmem:[%s389 + $0x18] sm:$0xff]
    %v394 = vld [vmem:[%s389 + $0x20] sm:$0xff]
    %v395 = vld [vmem:[%s389 + $0x28] sm:$0xff]
    %v396 = vld [vmem:[%s389 + $0x30] sm:$0xff]
    %v397 = vld [vmem:[%s389 + $0x38] sm:$0xff]
    %v398 = vld [vmem:[%s389 + $0x40] sm:$0xff]
    %v399 = vld [vmem:[%s389 + $0x48] sm:$0xff]
    %v400 = vld [vmem:[%s389 + $0x50] sm:$0xff]
    %v401 = vld [vmem:[%s389 + $0x58] sm:$0xff]
    %v402 = vld [vmem:[%s389 + $0x60] sm:$0xff]
    %v403 = vld [vmem:[%s389 + $0x68] sm:$0xff]
    %v404 = vld [vmem:[%s389 + $0x70] sm:$0xff]
    %v405 = vld [vmem:[%s389 + $0x78] sm:$0xff]
    %406 = vmatprep.subr.mxu0 0.0
    %407 = vmatpush1.msra.mxu0 %v405
    %408 = vmatprep.subr.mxu0 0.0
    %409 = vmatpush1.msra.mxu0 %v404
    %410 = vmatprep.subr.mxu0 0.0
    %411 = vmatpush1.msra.mxu0 %v403
    %412 = vmatprep.subr.mxu0 0.0
    %413 = vmatpush1.msra.mxu0 %v402
    %414 = vmatprep.subr.mxu0 0.0
    %415 = vmatpush1.msra.mxu0 %v401
    %416 = vmatprep.subr.mxu0 0.0
    %417 = vmatpush1.msra.mxu0 %v400
    %418 = vmatprep.subr.mxu0 0.0
    %419 = vmatpush1.msra.mxu0 %v399
    %420 = vmatprep.subr.mxu0 0.0
    %421 = vmatpush1.msra.mxu0 %v398
    %422 = vmatprep.subr.mxu0 0.0
    %423 = vmatpush1.msra.mxu0 %v397
    %424 = vmatprep.subr.mxu0 0.0
    %425 = vmatpush1.msra.mxu0 %v396
    %426 = vmatprep.subr.mxu0 0.0
    %427 = vmatpush1.msra.mxu0 %v395
    %428 = vmatprep.subr.mxu0 0.0
    %429 = vmatpush1.msra.mxu0 %v394
    %430 = vmatprep.subr.mxu0 0.0
    %431 = vmatpush1.msra.mxu0 %v393
    %432 = vmatprep.subr.mxu0 0.0
    %433 = vmatpush1.msra.mxu0 %v392
    %434 = vmatprep.subr.mxu0 0.0
    %435 = vmatpush1.msra.mxu0 %v391
    %436 = vmatprep.subr.mxu0 0.0
    %437 = vmatpush1.msra.mxu0 %v390
    %438 = vmatprep.subr.mxu0 0.0
    %439 = vmatpush2.msra.mxu0 0.0
    %440 = vmatprep.subr.mxu0 0.0
    %441 = vmatpush2.msra.mxu0 0.0
    %442 = vmatprep.subr.mxu0 0.0
    %443 = vmatpush2.msra.mxu0 0.0
    %444 = vmatprep.subr.mxu0 0.0
    %445 = vmatpush2.msra.mxu0 0.0
    %446 = vmatprep.subr.mxu0 0.0
    %447 = vmatpush2.msra.mxu0 0.0
    %448 = vmatprep.subr.mxu0 0.0
    %449 = vmatpush2.msra.mxu0 0.0
    %450 = vmatprep.subr.mxu0 0.0
    %451 = vmatpush2.msra.mxu0 0.0
    %452 = vmatprep.subr.mxu0 0.0
    %453 = vmatpush2.msra.mxu0 0.0
    %454 = vmatprep.subr.mxu0 0.0
    %455 = vmatpush2.msra.mxu0 0.0
    %456 = vmatprep.subr.mxu0 0.0
    %457 = vmatpush2.msra.mxu0 0.0
    %458 = vmatprep.subr.mxu0 0.0
    %459 = vmatpush2.msra.mxu0 0.0
    %460 = vmatprep.subr.mxu0 0.0
    %461 = vmatpush2.msra.mxu0 0.0
    %462 = vmatprep.subr.mxu0 0.0
    %463 = vmatpush2.msra.mxu0 0.0
    %464 = vmatprep.subr.mxu0 0.0
    %465 = vmatpush2.msra.mxu0 0.0
    %466 = vmatprep.subr.mxu0 0.0
    %467 = vmatpush2.msra.mxu0 0.0
    %468 = vmatprep.subr.mxu0 0.0
    %469 = vmatpush2.msra.mxu0 0.0
    %470 = vmatprep.mubr.f32.mxu0 0.0
    %471 = vmatmul.mubr.f32.gmra.mxu0 %v214
    %v472 = vpop.f32.mrf.mxu0
    %v473 = vadd.f32 0.0, %v472
    %v474 = vpop.f32.mrf.mxu0
    %475 = vdwg.mxu0
    %v476 = vmax.f32 %v388, %v473
    %477 = vst [vmem:[#allocation11] sm:$0xf] %v476
    %v478 = vlaneseq
    %v479 = vand.u32 %v478, 127
    %s480 = smul.u32 0, 128
    %v481 = vstv %s480
    %v482 = vadd.s32 %v479, %v481
    %v483 = vld [vmem:[%s3] sm:$0xf]
    %484 = vset.pattern.permute.xlu0 0
    %485 = vperm.xlu0 %484, %v483
    %v486 = vpop.permute.xlu0 %485
    %vm487 = vcmp.eq.s32.totalorder %v482, %v486
    %v488 = vsel %vm487, 1, 0
    %v489 = vcvt.s32.f32 %v488
    %vm490 = vcmp.lt.s32.totalorder %v482, 16
    %v491 = vld [vmem:[%s4] sm:$0xf]
    %v492 = vmul.f32 %v476, %v476
    %v493 = vsub.f32 1.0, %v492
    %v494 = vmax.f32 %v493, 0.0
    %v495 = vrsqrt.pop %v494
    %v496 = vmul.f32 %v494, %v495
    %vm497 = vcmp.eq.f32.partialorder %v494, inf
    %v498 = vsel %vm497, %v494, %v496
    %vm499 = vcmp.eq.f32.partialorder %v494, 0.0
    %v500 = vand.u32 %v494, 2147483648
    %v501 = vsel %vm499, %v500, %v498
    %503 = vset.pattern.permute.xlu0 0
    %504 = vperm.xlu0 %503, %v491
    %v505 = vpop.permute.xlu0 %504
    %v507 = vmul.f32 %v476, %v505
    %508 = vset.pattern.permute.xlu0 1
    %509 = vperm.xlu0 %508, %v491
    %v510 = vpop.permute.xlu0 %509
    %v512 = vmul.f32 %v501, %v510
    %v513 = vsub.f32 %v507, %v512
    %514 = vset.pattern.permute.xlu0 2
    %515 = vperm.xlu0 %514, %v491
    %v516 = vpop.permute.xlu0 %515
    %vm518 = vcmp.gt.f32.partialorder %v476, %v516
    %519 = vset.pattern.permute.xlu0 3
    %520 = vperm.xlu0 %519, %v491
    %v521 = vpop.permute.xlu0 %520
    %v523 = vsub.f32 %v476, %v521
    %v524 = vsel %vm518, %v513, %v523
    %v525 = vmul.f32 %v489, %v524
    %v526 = vsub.f32 1.0, %v489
    %v527 = vmul.f32 %v526, %v476
    %v528 = vadd.f32 %v525, %v527
    %v529 = vmul.f32 %v528, 30.0
    %v530 = vsel %vm490, %v529, -1e+30
    %vm531 = vcmask 1043456
    %v532 = vsel %vm531, %v530, -inf
    %533 = vmax.xlane.f32.xlu0 %v532
    %v534 = vpop.xlane.xlu0 %533
    %v535 = vld [vmem:[#allocation3] sm:$0xf]
    %v536 = vmax.f32 %v535, %v534
    %v537 = vsub.f32 %v535, %v536
    %v538 = vmul.f32 %v537, 1.442695
    %v539 = vpow.pop %v538
    %v540 = vld [vmem:[#allocation4] sm:$0xf]
    %v541 = vmul.f32 %v539, %v540
    %543 = vset.pattern.permute.xlu0 0
    %544 = vperm.xlu0 %543, %v536
    %v545 = vpop.permute.xlu0 %544
    %v547 = vsub.f32 %v530, %v545
    %v548 = vmul.f32 %v547, 1.442695
    %v549 = vpow.pop %v548
    %v550 = vsel %vm531, %v549, 0.0
    %551 = vadd.xlane.f32.xlu0 %v550
    %v552 = vpop.xlane.xlu0 %551
    %v553 = vadd.f32 %v541, %v552
    %vm554 = vcmask 3072
    %555 = vst.msk [vmem:[#allocation4] sm:$0xf] %vm554, %v553
    %556 = vst.msk [vmem:[#allocation3] sm:$0xf] %vm554, %v536
    %v557 = vld [vmem:[#allocation5] sm:$0xf]
    %v558 = vmul.f32 %v530, %v489
    %v559 = vsel %vm531, %v558, 0.0
    %560 = vadd.xlane.f32.xlu0 %v559
    %v561 = vpop.xlane.xlu0 %560
    %v562 = vadd.f32 %v557, %v561
    %563 = vst.msk [vmem:[#allocation5] sm:$0xf] %vm554, %v562
    // Predicated region
    $region34: #{tpu_custom_call.1} parent=1 // pred_check
      %p564 = pneg %p52
    $region35: #{tpu_custom_call.1} parent=1 // pred_check_branch
      %566 = sbr.rel (%p564) target = $region37
    $region36: #{tpu_custom_call.1} parent=1 // pred_region
      %v567 = vld [vmem:[#allocation3] sm:$0xf]
      %v568 = vld [vmem:[#allocation4] sm:$0xf]
      %v569 = vlog2.pop %v568
      %v570 = vmul.f32 %v569, 0.6931472
      %v571 = vadd.f32 %v567, %v570
      %v572 = vld [vmem:[#allocation5] sm:$0xf]
      %v573 = vsub.f32 %v571, %v572
      %v574 = vsel %vm554, %v573, 0.0
      %v575 = vrot.slane %v574, 4
      %v576 = vadd.f32 %v574, %v575
      %v577 = vrot.slane %v576, 2
      %v578 = vadd.f32 %v576, %v577
      %v579 = vrot.slane %v578, 1
      %v580 = vadd.f32 %v578, %v579
      %v581 = vmul.f32 %v580, 0.25
      %vm582 = vcmask 0
      %583 = vst.msk [vmem:[#allocation12] sm:$0x1] %vm582, %v581
    $region37: #{tpu_custom_call.1} parent=1 // pred_fallthru
      _
    // Predicated region
    $region38: #{tpu_custom_call.1} parent=1 // pred_check
      _
    $region39: #{tpu_custom_call.1} parent=1 // pred_check_branch
      %585 = sbr.rel (0) target = $region41
    $region40: #{tpu_custom_call.1} parent=1 // pred_region
      %s587 = ssub.s32 64, 64
      %588 = vsyncadd [#allocation8], %s587
      %s590 = sshll.u32 [#allocation11], 4
      %s591 = int_to_ptr.vmem [resolvable:$true] %s590
      %593 = dma.vmem_to_hbm [thread:$0]  %s591, 64, %s5, [#allocation8]
    $region41: #{tpu_custom_call.1} parent=1 // pred_fallthru
      _
    // Predicated region
    $region42: #{tpu_custom_call.1} parent=1 // pred_check
      _
    $region43: #{tpu_custom_call.1} parent=1 // pred_check_branch
      %595 = sbr.rel (0) target = $region45
    $region44: #{tpu_custom_call.1} parent=1 // pred_region
      %s597 = ssub.s32 16, 16
      %598 = vsyncadd [#allocation13], %s597
      %s600 = sshll.u32 [#allocation12], 4
      %s601 = int_to_ptr.vmem [resolvable:$true] %s600
      %603 = dma.vmem_to_hbm [thread:$0]  %s601, 16, %s6, [#allocation13]
    $region45: #{tpu_custom_call.1} parent=1 // pred_fallthru
      _
    // Predicated region
    $region46: #{tpu_custom_call.1} parent=1 // pred_check
      _
    $region47: #{tpu_custom_call.1} parent=1 // pred_check_branch
      %605 = sbr.rel (0) target = $region49
    $region48: #{tpu_custom_call.1} parent=1 // pred_region
      %606 = dma.done [#allocation8], 64
    $region49: #{tpu_custom_call.1} parent=1 // pred_fallthru
      _
    // Predicated region
    $region50: #{tpu_custom_call.1} parent=1 // pred_check
      _
    $region51: #{tpu_custom_call.1} parent=1 // pred_check_branch
      %608 = sbr.rel (0) target = $region53
    $region52: #{tpu_custom_call.1} parent=1 // pred_region
      %609 = dma.done [#allocation13], 16
    $region53: #{tpu_custom_call.1} parent=1 // pred_fallthru
      _
    %610 = vsyncpa [#allocation7], 1
    %611 = vsyncpa [#allocation10], 1
    %612 = vsyncpa [#allocation8], 1
    %613 = vsyncpa [#allocation13], 1

</llo_original>
